<compile_context>
chip_gen: v7x
topology: tpu7x:2x2x1
jax: 0.10.0
libtpu: 0.0.40
codegen_flags: <defaults>
</compile_context>

<pallas_src>
import functools
import numpy as np
import jax
import jax.numpy as jnp
from jax.experimental import pallas as pl
from jax.experimental.pallas import tpu as pltpu

_VMEM_LIMIT = 32 * 1024 * 1024   # safe on v5e/v6e (128 MiB) and v7x (64 MiB physical)


# ----------------------------- tiling helpers -----------------------------

def _round_up(x, m):
    return (x + m - 1) // m * m


def _pick_k(k):
    """Pad the matmul K dim; single full-K tile whenever it fits VMEM (dim=768, mlp=3072 do)."""
    p = _round_up(k, 128)
    if p <= 4096:
        return p, p
    for t in (512, 256):                  # 256-multiples only (v6e/v7x MXU is 256 wide)
        if p % t == 0:
            return p, t
    return _round_up(k, 512), 512


def _pick_n(n):
    """Pad the matmul N dim and choose the lane tile along it (256-multiples when tiled)."""
    p = _round_up(n, 128)
    if p <= 1024:
        return p, p
    for t in (512, 256):
        if p % t == 0:
            return p, t
    return _round_up(n, 512), 512


def _pick_tm(mp):
    """Largest row tile that divides the (already 8-aligned) row count."""
    for t in (512, 256, 128, 64, 32, 16, 8):
        if mp % t == 0:
            return t
    return 8


# ----------------------------- in-kernel math helpers -----------------------------

def _erf_f32(x):
    # Abramowitz & Stegun 7.1.26 (max abs err ~1.5e-7)
    p = 0.3275911
    a1, a2, a3, a4, a5 = 0.254829592, -0.284496736, 1.421413741, -1.453152027, 1.061405429
    ax = jnp.abs(x)
    t = 1.0 / (1.0 + p * ax)
    poly = ((((a5 * t + a4) * t + a3) * t + a2) * t + a1) * t
    y = 1.0 - poly * jnp.exp(-ax * ax)
    return jnp.where(x >= 0.0, y, -y)


def _gelu(x):
    return 0.5 * x * (1.0 + _erf_f32(x * np.float32(1.0 / np.sqrt(2.0))))


# ----------------------------- matmul kernel (LN + bias + act + residual fused) -----------------------------

def _make_mm_kernel(act, has_residual, has_ln, ln_eps, out_dtype):
    def kernel(*refs):
        a_ref, b_ref, bias_ref = refs[0], refs[1], refs[2]
        i = 3
        if has_ln:
            g_ref, beta_ref = refs[i], refs[i + 1]
            i += 2
        if has_residual:
            r_ref = refs[i]
            i += 1
        o_ref, acc_ref = refs[i], refs[i + 1]

        k = pl.program_id(2)

        @pl.when(k == 0)
        def _():
            acc_ref[...] = jnp.zeros_like(acc_ref)

        a = a_ref[...]
        if has_ln:
            # Fused pre-LayerNorm on the A tile (only used when tk == Kp == normalized dim).
            xf = a.astype(jnp.float32)
            mean = jnp.mean(xf, axis=-1, keepdims=True)
            d = xf - mean
            var = jnp.mean(d * d, axis=-1, keepdims=True)
            a = (d * jax.lax.rsqrt(var + ln_eps) * g_ref[...] + beta_ref[...]).astype(jnp.bfloat16)

        acc_ref[...] += jnp.dot(a, b_ref[...], preferred_element_type=jnp.float32)

        @pl.when(k == pl.num_programs(2) - 1)
        def _():
            y = acc_ref[...] + bias_ref[...]
            if act == "gelu":
                y = _gelu(y)                                  # epilogue math kept in f32 (v5e VPU)
            if has_residual:
                y = y + r_ref[...].astype(jnp.float32)
            o_ref[...] = y.astype(out_dtype)

    return kernel


@functools.lru_cache(maxsize=None)
def _matmul_call(Mp, Kp, Np, tm, tk, tn, act, has_residual, has_ln, ln_eps, out_dtype):
    kernel = _make_mm_kernel(act, has_residual, has_ln, ln_eps, out_dtype)
    in_specs = [
        pl.BlockSpec((tm, tk), lambda i, j, k: (i, k)),
        pl.BlockSpec((tk, tn), lambda i, j, k: (k, j)),
        pl.BlockSpec((1, tn), lambda i, j, k: (0, j)),
    ]
    if has_ln:
        in_specs.append(pl.BlockSpec((1, tk), lambda i, j, k: (0, k)))
        in_specs.append(pl.BlockSpec((1, tk), lambda i, j, k: (0, k)))
    if has_residual:
        in_specs.append(pl.BlockSpec((tm, tn), lambda i, j, k: (i, j)))
    call = pl.pallas_call(
        kernel,
        out_shape=jax.ShapeDtypeStruct((Mp, Np), out_dtype),
        grid=(Mp // tm, Np // tn, Kp // tk),
        in_specs=in_specs,
        out_specs=pl.BlockSpec((tm, tn), lambda i, j, k: (i, j)),
        scratch_shapes=[pltpu.VMEM((tm, tn), jnp.float32)],
        compiler_params=pltpu.CompilerParams(
            dimension_semantics=("parallel", "parallel", "arbitrary"),
            vmem_limit_bytes=_VMEM_LIMIT),
    )
    return jax.jit(call)


def linear_p(x, lin, act="none", residual=None, ln=None, out_dtype=jnp.bfloat16):
    """x: [M, K] bf16 (rows already a multiple of 8 in the main pipeline).
    lin: prepped padded bf16 weight / f32 bias. ln: optional fused pre-LayerNorm params.
    Returns [M, n] in out_dtype (no host pad/slice when M, n are already aligned)."""
    x = x.astype(jnp.bfloat16)
    M, K = x.shape
    Kp, Np, tk, tn = lin["kp"], lin["np"], lin["tk"], lin["tn"]
    if K != Kp:
        assert K == lin["k"]
        x = jnp.pad(x, ((0, 0), (0, Kp - K)))
    Mp = _round_up(max(M, 8), 8)
    if Mp != M:
        x = jnp.pad(x, ((0, Mp - M), (0, 0)))
    tm = _pick_tm(Mp)

    has_ln = ln is not None
    if has_ln:
        assert tk == Kp == lin["k"] == ln["d"] == ln["dp"], "LN fusion needs a full, unpadded K tile"

    args = [x, lin["w"], lin["b"]]
    if has_ln:
        args += [ln["g"], ln["b"]]
    if residual is not None:
        assert lin["np"] == lin["n"]
        r = residual.astype(jnp.bfloat16)
        if r.shape[0] != Mp:
            r = jnp.pad(r, ((0, Mp - r.shape[0]), (0, 0)))
        args.append(r)

    call = _matmul_call(Mp, Kp, Np, tm, tk, tn, act, residual is not None,
                        has_ln, float(ln["eps"]) if has_ln else 0.0, out_dtype)
    out = call(*args)
    if Mp != M or Np != lin["n"]:
        out = out[:M, :lin["n"]]
    return out


# ----------------------------- standalone LayerNorm kernel (only where output is reused as residual) ------

def _ln_kernel(x_ref, g_ref, b_ref, o_ref, *, eps):
    x = x_ref[...].astype(jnp.float32)
    mean = jnp.mean(x, axis=-1, keepdims=True)
    d = x - mean
    var = jnp.mean(d * d, axis=-1, keepdims=True)
    o_ref[...] = (d * jax.lax.rsqrt(var + eps) * g_ref[...] + b_ref[...]).astype(o_ref.dtype)


@functools.lru_cache(maxsize=None)
def _layernorm_call(Mp, D, tm, eps):
    call = pl.pallas_call(
        functools.partial(_ln_kernel, eps=eps),
        out_shape=jax.ShapeDtypeStruct((Mp, D), jnp.bfloat16),
        grid=(Mp // tm,),
        in_specs=[pl.BlockSpec((tm, D), lambda i: (i, 0)),
                  pl.BlockSpec((1, D), lambda i: (0, 0)),
                  pl.BlockSpec((1, D), lambda i: (0, 0))],
        out_specs=pl.BlockSpec((tm, D), lambda i: (i, 0)),
        compiler_params=pltpu.CompilerParams(dimension_semantics=("parallel",),
                                             vmem_limit_bytes=_VMEM_LIMIT),
    )
    return jax.jit(call)


def layernorm_p(x, ln):
    M, D = x.shape
    assert D == ln["d"] == ln["dp"]
    Mp = _round_up(max(M, 8), 8)
    if Mp != M:
        x = jnp.pad(x, ((0, Mp - M), (0, 0)))
    out = _layernorm_call(Mp, D, _pick_tm(Mp), float(ln["eps"]))(x.astype(jnp.bfloat16), ln["g"], ln["b"])
    return out[:M] if Mp != M else out


# ----------------------------- fused attention kernel (all heads per batch step) --------------------------

def _attn_kernel(q_ref, k_ref, v_ref, o_ref, *, scale, n_k, mask_keys):
    q = q_ref[...]                      # [H, Nq, dh] bf16
    k = k_ref[...]                      # [H, Nk, dh] bf16
    v = v_ref[...]                      # [H, Nk, dh] bf16
    s = jax.lax.dot_general(q, k, (((2,), (2,)), ((0,), (0,))),
                            preferred_element_type=jnp.float32) * scale     # [H, Nq, Nk] f32
    if mask_keys:
        col = jax.lax.broadcasted_iota(jnp.int32, s.shape, 2)
        s = jnp.where(col < n_k, s, -1e30)        # scores stay f32, so -1e30 is safe
    m = jnp.max(s, axis=-1, keepdims=True)
    p = jnp.exp(s - m)
    l = jnp.sum(p, axis=-1, keepdims=True)
    o = jax.lax.dot_general(p.astype(v.dtype), v, (((2,), (1,)), ((0,), (0,))),
                            preferred_element_type=jnp.float32)             # [H, Nq, dh]
    o_ref[...] = (o * pl.reciprocal(l, approx=True)).astype(o_ref.dtype)
    # TODO(synk): attention-probability dropout is identity (eval mode).


@functools.lru_cache(maxsize=None)
def _attention_call(B, H, Nq, Nk, dh, scale, n_k, mask_keys):
    call = pl.pallas_call(
        functools.partial(_attn_kernel, scale=scale, n_k=n_k, mask_keys=mask_keys),
        out_shape=jax.ShapeDtypeStruct((B, H, Nq, dh), jnp.bfloat16),
        grid=(B,),
        in_specs=[pl.BlockSpec((None, H, Nq, dh), lambda b: (b, 0, 0, 0)),
                  pl.BlockSpec((None, H, Nk, dh), lambda b: (b, 0, 0, 0)),
                  pl.BlockSpec((None, H, Nk, dh), lambda b: (b, 0, 0, 0))],
        out_specs=pl.BlockSpec((None, H, Nq, dh), lambda b: (b, 0, 0, 0)),
        compiler_params=pltpu.CompilerParams(dimension_semantics=("parallel",),
                                             vmem_limit_bytes=_VMEM_LIMIT),
    )
    return jax.jit(call)


def mha(qh, kh, vh, scale, n_k):
    """qh: [B, Nq, H, dh] bf16; kh/vh: [B, Nk, H, dh] bf16. Keys >= n_k are masked.
    Returns [B, Nq, H*dh] bf16."""
    B, Nq, H, dh = qh.shape
    Nk = kh.shape[1]
    q = qh.transpose(0, 2, 1, 3)
    k = kh.transpose(0, 2, 1, 3)
    v = vh.transpose(0, 2, 1, 3)
    mask_keys = int(n_k) < Nk
    out = _attention_call(B, H, Nq, Nk, dh, float(scale), int(n_k), bool(mask_keys))(q, k, v)
    return out.transpose(0, 2, 1, 3).reshape(B, Nq, H * dh)


# ----------------------------- parameter init (weights prepped/padded/cast once) --------------------------

def _prep_linear(w, b):
    K, N = w.shape
    Kp, tk = _pick_k(K)
    Np, tn = _pick_n(N)
    wp = jnp.zeros((Kp, Np), jnp.bfloat16).at[:K, :N].set(w.astype(jnp.bfloat16))
    bias = jnp.zeros((1, Np), jnp.float32)
    if b is not None:
        bias = bias.at[0, :N].set(b)
    return {"w": wp, "b": bias, "k": K, "n": N, "kp": Kp, "np": Np, "tk": tk, "tn": tn}


def _init_linear(key, din, dout, bias=True):
    k1, k2 = jax.random.split(key)
    bound = 1.0 / np.sqrt(din)
    w = jax.random.uniform(k1, (din, dout), jnp.float32, -bound, bound)
    b = jax.random.uniform(k2, (dout,), jnp.float32, -bound, bound) if bias else None
    return _prep_linear(w, b)


def _init_ln(d, eps=1e-5):
    Dp = _round_up(d, 128)
    g = jnp.zeros((1, Dp), jnp.float32).at[0, :d].set(1.0)
    b = jnp.zeros((1, Dp), jnp.float32)
    return {"g": g, "b": b, "d": d, "dp": Dp, "eps": eps}


def _init_vit(key, cfg):
    dim, patch, in_ch = cfg["dim"], cfg["patch"], cfg["in_ch"]
    depth, heads, mlp = cfg["vit_depth"], cfg["vit_heads"], cfg["vit_mlp"]
    n_tokens = (cfg["img"] // patch) ** 2 + 1
    keys = jax.random.split(key, 4 + depth)
    p = {}
    fan_in = in_ch * patch * patch
    bound = 1.0 / np.sqrt(fan_in)
    w = jax.random.uniform(keys[0], (fan_in, dim), jnp.float32, -bound, bound)
    b = jax.random.uniform(keys[1], (dim,), jnp.float32, -bound, bound)
    p["patch_embed"] = _prep_linear(w, b)
    p["cls_token"] = jax.random.normal(keys[2], (1, 1, dim), jnp.float32) * 0.02
    p["pos_embed"] = jax.random.normal(keys[3], (1, n_tokens, dim), jnp.float32) * 0.02
    dh = dim // heads
    layers = []
    for i in range(depth):
        lk = jax.random.split(keys[4 + i], 4)
        layers.append({
            "ln1": _init_ln(dim, eps=1e-12),
            "qkv": _init_linear(lk[0], dim, 3 * dim),      # q,k,v fused along N
            "proj": _init_linear(lk[1], dim, dim),
            "ln2": _init_ln(dim, eps=1e-12),
            "fc1": _init_linear(lk[2], dim, mlp),
            "fc2": _init_linear(lk[3], mlp, dim),
            "heads": heads,
            "scale": 1.0 / np.sqrt(dh),
        })
    p["layers"] = layers
    p["ln_final"] = _init_ln(dim, eps=1e-12)
    return p


def _init_custom_attention(key, dim, heads, dim_head):
    inner = heads * dim_head
    ks = jax.random.split(key, 4)
    return {
        "to_q": _init_linear(ks[0], dim, inner, bias=False),
        "to_k": _init_linear(ks[1], dim, inner, bias=False),
        "to_v": _init_linear(ks[2], dim, inner, bias=False),
        "to_out": _init_linear(ks[3], inner, dim),
        "heads": heads,
        "scale": dim_head ** (-0.5),
    }


def _init_transformer(key, dim, depth, heads, dim_head, mlp_dim):
    keys = jax.random.split(key, depth)
    p = {"lnk": _init_ln(dim), "lnv": _init_ln(dim), "layers": []}
    for i in range(depth):
        lk = jax.random.split(keys[i], 4)
        p["layers"].append({
            "ln1": _init_ln(dim),
            "cxattn": _init_custom_attention(lk[0], dim, heads, dim_head),
            "ln2": _init_ln(dim),
            "sattn": _init_custom_attention(lk[1], dim, heads, dim_head),
            "ff_ln": _init_ln(dim),
            "ff_fc1": _init_linear(lk[2], dim, mlp_dim),
            "ff_fc2": _init_linear(lk[3], mlp_dim, dim),
        })
    return p


def init_geoguess1_params(key, cfg):
    keys = jax.random.split(key, 6)
    dim = cfg["dim"]
    params = {"cfg": cfg}
    params["backbone"] = _init_vit(keys[0], cfg)
    params["trans"] = _init_transformer(keys[1], dim, cfg["trans_depth"], cfg["trans_heads"],
                                        cfg["trans_dim_head"], cfg["trans_mlp"])
    params["queries"] = jax.random.uniform(keys[2], (16, 3, dim), jnp.float32)   # torch.rand
    # Three classification heads fused along N into one weight-streaming matmul.
    n1, n2, n3 = cfg["head_dims"]
    ws, bs_ = [], []
    for kk, n in zip(keys[3:6], (n1, n2, n3)):
        k1, k2 = jax.random.split(kk)
        bound = 1.0 / np.sqrt(dim)
        ws.append(jax.random.uniform(k1, (dim, n), jnp.float32, -bound, bound))
        bs_.append(jax.random.uniform(k2, (n,), jnp.float32, -bound, bound))
    params["cls_all"] = _prep_linear(jnp.concatenate(ws, axis=1), jnp.concatenate(bs_))
    return params


# ----------------------------- forward pass -----------------------------

def _vit_forward(p, x_nchw, cfg):
    B, C, H, W = x_nchw.shape
    patch, dim, heads = cfg["patch"], cfg["dim"], cfg["vit_heads"]
    dh = dim // heads
    hp, wp = H // patch, W // patch
    n_tok = hp * wp + 1
    Ns = _round_up(n_tok, 8)          # sequence padded ONCE; slab stays padded all the way

    # Non-overlapping patch conv == reshape + matmul (no im2col duplication).
    patches = x_nchw.reshape(B, C, hp, patch, wp, patch)
    patches = patches.transpose(0, 2, 4, 1, 3, 5).reshape(B * hp * wp, C * patch * patch)
    tok = linear_p(patches.astype(jnp.bfloat16), p["patch_embed"])           # [B*hp*wp, dim] bf16
    tok = tok.reshape(B, hp * wp, dim).astype(jnp.float32)
    cls = jnp.broadcast_to(p["cls_token"], (B, 1, dim))
    seq = jnp.concatenate([cls, tok], axis=1) + p["pos_embed"]               # [B, n_tok, dim] f32
    # TODO(synk): ViT embedding dropout is identity (eval mode).

    x = jnp.zeros((B, Ns, dim), jnp.bfloat16).at[:, :n_tok, :].set(seq.astype(jnp.bfloat16))
    h = x.reshape(B * Ns, dim)                                               # bf16 padded slab

    for blk in p["layers"]:
        # LN1 fused into the QKV matmul (pre-LN block; residual uses the un-normalized h).
        qkv = linear_p(h, blk["qkv"], ln=blk["ln1"])                         # [B*Ns, 3*dim] bf16
        qkv = qkv.reshape(B, Ns, 3, heads, dh)
        q, k, v = qkv[:, :, 0], qkv[:, :, 1], qkv[:, :, 2]                   # [B, Ns, H, dh]
        attn = mha(q, k, v, blk["scale"], n_tok)                             # padded keys masked
        h = linear_p(attn.reshape(B * Ns, dim), blk["proj"], residual=h)     # fused residual
        # LN2 fused into fc1; GELU fused; residual fused into fc2.
        y = linear_p(h, blk["fc1"], ln=blk["ln2"], act="gelu")
        h = linear_p(y, blk["fc2"], residual=h)

    h = layernorm_p(h, p["ln_final"])
    return h.reshape(B, Ns, dim), n_tok


def _custom_attn(p, q2d, kv2d, B, Nq, Nk, n_k, lnk, lnv, residual):
    """CustomAttention: q2d [B*Nq, dim], kv2d [B*Nk, dim] (bf16). lnk/lnv optionally fused
    into to_k/to_v (the decoder's shared key/value LayerNorms). Residual fused into to_out."""
    H = p["heads"]
    inner = p["to_q"]["n"]
    dh = inner // H
    qp = linear_p(q2d, p["to_q"]).reshape(B, Nq, H, dh)
    kp = linear_p(kv2d, p["to_k"], ln=lnk).reshape(B, Nk, H, dh)
    vp = linear_p(kv2d, p["to_v"], ln=lnv).reshape(B, Nk, H, dh)
    out = mha(qp, kp, vp, p["scale"], n_k)                                   # [B, Nq, inner] bf16
    out = linear_p(out.reshape(B * Nq, inner), p["to_out"], residual=residual)
    # TODO(synk): to_out dropout is identity (eval mode).
    return out


def _transformer_forward(p, q, feats, n_tok):
    B, Nq, dim = q.shape
    Ns = feats.shape[1]
    q_slab = q.reshape(B * Nq, dim).astype(jnp.bfloat16)
    f_slab = feats.reshape(B * Ns, dim)                                      # bf16 (padded tokens)
    # NOTE: the original computes q1 = lnk(q) but never uses it; omitted (no output effect).
    # lnk(k) / lnv(v) are fused into each layer's to_k / to_v matmuls (identical math).
    x = q_slab
    for layer in p["layers"]:
        # Faithful to the original loop: each layer re-normalizes `q` (not x); only the
        # last layer's x reaches the output.
        q_slab = layernorm_p(q_slab, layer["ln1"])
        x = _custom_attn(layer["cxattn"], q_slab, f_slab, B, Nq, Ns, n_tok,
                         lnk=p["lnk"], lnv=p["lnv"], residual=q_slab)
        x = layernorm_p(x, layer["ln2"])
        x = _custom_attn(layer["sattn"], x, x, B, Nq, Nq, Nq,
                         lnk=None, lnv=None, residual=x)
        y = linear_p(x, layer["ff_fc1"], ln=layer["ff_ln"], act="gelu")      # PreNorm fused
        x = linear_p(y, layer["ff_fc2"], residual=x)
    return x.reshape(B, Nq, dim)


def geoguess1_forward(params, x, evaluate=False):
    cfg = params["cfg"]
    bs = x.shape[0]
    dim = cfg["dim"]
    feats, n_tok = _vit_forward(params["backbone"], x.astype(jnp.float32), cfg)   # [bs, Ns, dim] bf16
    qs = jnp.broadcast_to(params["queries"].reshape(1, 48, dim), (bs, 48, dim))
    x_out = _transformer_forward(params["trans"], qs, feats, n_tok)               # [bs, 48, dim] bf16

    x_out4 = x_out.reshape(bs, 16, 3, dim).astype(jnp.float32)
    scene_preds = jnp.mean(x_out4[:, :, :, 0], axis=2)                            # [bs, 16]
    scene_choice = jnp.argmax(scene_preds, axis=1)                                # [bs]
    x_sel = x_out4[jnp.arange(bs), scene_choice]                                  # [bs, 3, dim] f32

    # Fused classification heads: one matmul over the concatenated [cls1|cls2|cls3] weights.
    n1, n2, n3 = cfg["head_dims"]
    logits = linear_p(x_sel.reshape(bs * 3, dim).astype(jnp.bfloat16),
                      params["cls_all"], out_dtype=jnp.float32)                   # [bs*3, n1+n2+n3]
    logits = logits.reshape(bs, 3, n1 + n2 + n3)
    x1 = logits[:, 0, :n1]
    x2 = logits[:, 1, n1:n1 + n2]
    x3 = logits[:, 2, n1 + n2:]

    hier_conf = jax.nn.sigmoid(x_sel[:, :, 0])                                    # [bs, 3]
    if not evaluate:
        return (x1, x2, x3, scene_preds, hier_conf)
    return (x1, x2, x3, x_sel)


# ----------------------------- main -----------------------------

if __name__ == "__main__":
    # Small-but-architecturally-faithful config (real GeoGuess1 values in comments).
    cfg = {
        "img": 16,              # 224
        "patch": 8,             # 16
        "in_ch": 3,
        "dim": 128,             # 768  (n_features)
        "vit_depth": 2,         # 12
        "vit_heads": 4,         # 12
        "vit_mlp": 256,         # 3072
        "trans_depth": 2,       # 6
        "trans_heads": 4,       # 12
        "trans_dim_head": 32,   # 64
        "trans_mlp": 256,       # 1024
        "head_dims": (3298, 7202, 12893),   # trainset='train'
    }
    assert cfg["dim"] % cfg["vit_heads"] == 0

    key = jax.random.PRNGKey(0)
    pkey, xkey = jax.random.split(key)
    params = init_geoguess1_params(pkey, cfg)
    x = jax.random.normal(xkey, (2, 3, 16, 16), jnp.float32)   # NCHW input

    outs = geoguess1_forward(params, x, evaluate=False)
    outs = jax.block_until_ready(outs)
    x1, x2, x3, scene_preds, hier_conf = outs
    assert x1.shape == (2, 3298)
    assert x2.shape == (2, 7202)
    assert x3.shape == (2, 12893)
    assert scene_preds.shape == (2, 16)
    assert hier_conf.shape == (2, 3)
    assert all(bool(jnp.all(jnp.isfinite(o.astype(jnp.float32)))) for o in outs)
    print("KERNEL_OK")
</pallas_src>

<mosaic_0001>
module attributes {stable_mosaic.version = 11 : i64} {
  func.func @kernel(%arg0: i32, %arg1: i32, %arg2: i32, %arg3: memref<8x256xbf16, #tpu.memory_space<vmem>>, %arg4: memref<256x128xbf16, #tpu.memory_space<vmem>>, %arg5: memref<1x128xf32, #tpu.memory_space<vmem>>, %arg6: memref<8x128xbf16, #tpu.memory_space<vmem>>, %arg7: memref<8x128xf32, #tpu.memory_space<vmem>>) attributes {dimension_semantics = [#tpu.dimension_semantics<parallel>, #tpu.dimension_semantics<parallel>, #tpu.dimension_semantics<arbitrary>], iteration_bounds = array<i64: 1, 1, 1>, scalar_prefetch = 0 : i64, scratch_operands = 1 : i64, tpu.core_type = #tpu.core_type<tc>, window_params = [{transform_indices = @transform_0, window_bounds = array<i64: 8, 256>}, {transform_indices = @transform_1, window_bounds = array<i64: 256, 128>}, {transform_indices = @transform_2, window_bounds = array<i64: 1, 128>}, {transform_indices = @transform_3, window_bounds = array<i64: 8, 128>}]} {
    %c0_i32 = arith.constant 0 : i32
    %0 = arith.cmpi eq, %arg2, %c0_i32 : i32
    %1 = arith.extui %0 : i1 to i32
    %c0_i32_0 = arith.constant 0 : i32
    %2 = arith.cmpi ne, %1, %c0_i32_0 : i32
    scf.if %2 {
      %cst_10 = arith.constant 0.000000e+00 : f32
      %12 = vector.broadcast %cst_10 : f32 to vector<8x128xf32>
      %c0_11 = arith.constant 0 : index
      %c0_12 = arith.constant 0 : index
      %13 = vector.load %arg7[%c0_11, %c0_12] : memref<8x128xf32, #tpu.memory_space<vmem>>, vector<8x128xf32>
      tpu.vector_store %arg7[%c0_11, %c0_12], %12 {strides = array<i32>} : memref<8x128xf32, #tpu.memory_space<vmem>>, vector<8x128xf32>,
    } else {
    }
    %c0 = arith.constant 0 : index
    %c0_1 = arith.constant 0 : index
    %3 = vector.load %arg3[%c0, %c0_1] : memref<8x256xbf16, #tpu.memory_space<vmem>>, vector<8x256xbf16>
    %c0_2 = arith.constant 0 : index
    %c0_3 = arith.constant 0 : index
    %4 = vector.load %arg7[%c0_2, %c0_3] : memref<8x128xf32, #tpu.memory_space<vmem>>, vector<8x128xf32>
    %c0_4 = arith.constant 0 : index
    %c0_5 = arith.constant 0 : index
    %5 = vector.load %arg4[%c0_4, %c0_5] : memref<256x128xbf16, #tpu.memory_space<vmem>>, vector<256x128xbf16>
    %cst = arith.constant dense<0.000000e+00> : vector<8x128xf32>
    %6 = tpu.matmul %3, %5, %cst {dimension_numbers = #tpu.dot_dimension_numbers<[1], [0], [0], [1], [0, 0, 1, 1], [], []>} : vector<8x256xbf16>, vector<256x128xbf16>, vector<8x128xf32> -> vector<8x128xf32>
    %7 = arith.addf %4, %6 : vector<8x128xf32>
    %c0_6 = arith.constant 0 : index
    %c0_7 = arith.constant 0 : index
    %8 = vector.load %arg7[%c0_6, %c0_7] : memref<8x128xf32, #tpu.memory_space<vmem>>, vector<8x128xf32>
    tpu.vector_store %arg7[%c0_6, %c0_7], %7 {strides = array<i32>} : memref<8x128xf32, #tpu.memory_space<vmem>>, vector<8x128xf32>,
    %c0_i32_8 = arith.constant 0 : i32
    %9 = arith.cmpi eq, %arg2, %c0_i32_8 : i32
    %10 = arith.extui %9 : i1 to i32
    %c0_i32_9 = arith.constant 0 : i32
    %11 = arith.cmpi ne, %10, %c0_i32_9 : i32
    scf.if %11 {
      %c0_10 = arith.constant 0 : index
      %c0_11 = arith.constant 0 : index
      %12 = vector.load %arg7[%c0_10, %c0_11] : memref<8x128xf32, #tpu.memory_space<vmem>>, vector<8x128xf32>
      %c0_12 = arith.constant 0 : index
      %c0_13 = arith.constant 0 : index
      %13 = vector.load %arg5[%c0_12, %c0_13] : memref<1x128xf32, #tpu.memory_space<vmem>>, vector<1x128xf32>
      %14 = vector.broadcast %13 : vector<1x128xf32> to vector<8x128xf32>
      %15 = arith.addf %12, %14 : vector<8x128xf32>
      %16 = arith.truncf %15 : vector<8x128xf32> to vector<8x128xbf16>
      %c0_14 = arith.constant 0 : index
      %c0_15 = arith.constant 0 : index
      %17 = vector.load %arg6[%c0_14, %c0_15] : memref<8x128xbf16, #tpu.memory_space<vmem>>, vector<8x128xbf16>
      tpu.vector_store %arg6[%c0_14, %c0_15], %16 {strides = array<i32>} : memref<8x128xbf16, #tpu.memory_space<vmem>>, vector<8x128xbf16>,
    } else {
    }
    return
  }
  func.func @transform_0(%arg0: i32, %arg1: i32, %arg2: i32) -> (i32, i32) {
    %c0_i32 = arith.constant 0 : i32
    return %arg0, %arg2 : i32, i32
  }
  func.func @transform_1(%arg0: i32, %arg1: i32, %arg2: i32) -> (i32, i32) {
    %c0_i32 = arith.constant 0 : i32
    return %arg2, %arg1 : i32, i32
  }
  func.func @transform_2(%arg0: i32, %arg1: i32, %arg2: i32) -> (i32, i32) {
    %c0_i32 = arith.constant 0 : i32
    %c0_i32_0 = arith.constant 0 : i32
    return %c0_i32, %arg1 : i32, i32
  }
  func.func @transform_3(%arg0: i32, %arg1: i32, %arg2: i32) -> (i32, i32) {
    %c0_i32 = arith.constant 0 : i32
    return %arg0, %arg1 : i32, i32
  }
}

</mosaic_0001>

<llo_original>
// kernel: tpu_custom_call.1
$region0: #{tpu_custom_call.1}
  #allocation0 [shape = 'u32[]', space=smem, size = 0x4, offset = 0x4, fixed_abs, tag = 'smem constant byte address 0x4 - core index']
  #allocation1 [shape = 'u32[144,128]{1,0:T(1,128)}', space=vmem, size = 0x12000, scoped, tag = 'internal scratch']
  #allocation2 [shape = 'f32[8,128]{1,0:T(8,128)}', space=vmem, size = 0x1000, scoped, tag = 'scratch operand']
  %s0 = inlined_call_operand.hbm [shape: bf16[8,256], index: 0, kind: input, shape index: {}]
  %s1 = inlined_call_operand.hbm [shape: bf16[256,128], index: 1, kind: input, shape index: {}]
  %s2 = inlined_call_operand.vmem [shape: f32[1,128], index: 2, kind: input, shape index: {}]
  %s3 = inlined_call_operand.hbm [shape: bf16[8,128], index: 3, kind: output, shape index: {}]
  %s4 = sld [smem:[#allocation0]]
  $region38: #{tpu_custom_call.1} parent=0
    _
  %s6 = ssub.s32 1, %s4
  %s7 = scalar_select 0, %s6, %s4
  $region1: #{tpu_custom_call.1} parent=0
    #allocation3 [shape = 'u8[4096]{0}', space=vmem, size = 0x1000, scoped, tag = 'input window, operand 0, single buffered']
    #allocation4 [shape = 's32[1]{0}', space=sflag, size = 0x4, scoped, tag = 'scoped memory for tpu_custom_call.1']
    #allocation5 [shape = 's32[1]{0}', space=sflag, size = 0x4, scoped, tag = 'scoped memory for tpu_custom_call.1']
    #allocation6 [shape = 'u8[65536]{0}', space=vmem, size = 0x10000, scoped, tag = 'input window, operand 1, single buffered']
    #allocation7 [shape = 's32[1]{0}', space=sflag, size = 0x4, scoped, tag = 'scoped memory for tpu_custom_call.1']
    #allocation8 [shape = 'u8[2048]{0}', space=vmem, size = 0x800, scoped, tag = 'output window, operand 0, single buffered']
    %8 = vsyncpa [#allocation4], 0
    %9 = vsyncpa [#allocation7], 0
    %10 = vsyncpa [#allocation5], 0
    // Predicated region
    $region2: #{tpu_custom_call.1} parent=1 // pred_check
      _
    $region3: #{tpu_custom_call.1} parent=1 // pred_check_branch
      %12 = sbr.rel (0) target = $region5
    $region4: #{tpu_custom_call.1} parent=1 // pred_region
      %s14 = ssub.s32 128, 128
      %15 = vsyncadd [#allocation4], %s14
      %s17 = sshll.u32 [#allocation3], 4
      %s18 = int_to_ptr.vmem [resolvable:$true] %s17
      %20 = dma.hbm_to_vmem [thread:$0]  %s0, 128, %s18, [#allocation4]
    $region5: #{tpu_custom_call.1} parent=1 // pred_fallthru
      _
    // Predicated region
    $region6: #{tpu_custom_call.1} parent=1 // pred_check
      _
    $region7: #{tpu_custom_call.1} parent=1 // pred_check_branch
      %22 = sbr.rel (0) target = $region9
    $region8: #{tpu_custom_call.1} parent=1 // pred_region
      %s24 = ssub.s32 2048, 2048
      %25 = vsyncadd [#allocation7], %s24
      %s26 = sshll.u32 [#allocation6], 4
      %s27 = int_to_ptr.vmem [resolvable:$true] %s26
      %32 = dma.hbm_to_vmem [thread:$0]  %s1, 2048, %s27, [#allocation7], 64, 64, 4
    $region9: #{tpu_custom_call.1} parent=1 // pred_fallthru
      _
    // Predicated region
    $region10: #{tpu_custom_call.1} parent=1 // pred_check
      _
    $region11: #{tpu_custom_call.1} parent=1 // pred_check_branch
      %34 = sbr.rel (0) target = $region13
    $region12: #{tpu_custom_call.1} parent=1 // pred_region
      _
    $region13: #{tpu_custom_call.1} parent=1 // pred_fallthru
      _
    // Predicated region
    $region14: #{tpu_custom_call.1} parent=1 // pred_check
      _
    $region15: #{tpu_custom_call.1} parent=1 // pred_check_branch
      %36 = sbr.rel (0) target = $region17
    $region16: #{tpu_custom_call.1} parent=1 // pred_region
      %37 = dma.done [#allocation4], 128
    $region17: #{tpu_custom_call.1} parent=1 // pred_fallthru
      _
    // Predicated region
    $region18: #{tpu_custom_call.1} parent=1 // pred_check
      _
    $region19: #{tpu_custom_call.1} parent=1 // pred_check_branch
      %39 = sbr.rel (0) target = $region21
    $region20: #{tpu_custom_call.1} parent=1 // pred_region
      %40 = dma.done [#allocation7], 2048
    $region21: #{tpu_custom_call.1} parent=1 // pred_fallthru
      _
    %p42 = scmp.eq.s32.totalorder 0, 0
    // Predicated region
    $region22: #{tpu_custom_call.1} parent=1 // pred_check
      %p43 = pneg %p42
    $region23: #{tpu_custom_call.1} parent=1 // pred_check_branch
      %45 = sbr.rel (%p43) target = $region25
    $region24: #{tpu_custom_call.1} parent=1 // pred_region
      %46 = vst [vmem:[#allocation2] sm:$0xff] 0.0
    $region25: #{tpu_custom_call.1} parent=1 // pred_fallthru
      _
    %v47 = vld [vmem:[#allocation3] sm:$0xff]
    %v48 = vld [vmem:[#allocation2] sm:$0xff]
    %v49 = vld [vmem:[#allocation6] sm:$0xf]
    %v50 = vld [vmem:[#allocation6 + $0x4] sm:$0xf]
    %v51 = vld [vmem:[#allocation6 + $0x8] sm:$0xf]
    %v52 = vld [vmem:[#allocation6 + $0xc] sm:$0xf]
    %v53 = vld [vmem:[#allocation6 + $0x10] sm:$0xf]
    %v54 = vld [vmem:[#allocation6 + $0x14] sm:$0xf]
    %v55 = vld [vmem:[#allocation6 + $0x18] sm:$0xf]
    %v56 = vld [vmem:[#allocation6 + $0x1c] sm:$0xf]
    %v57 = vld [vmem:[#allocation6 + $0x20] sm:$0xf]
    %v58 = vld [vmem:[#allocation6 + $0x24] sm:$0xf]
    %v59 = vld [vmem:[#allocation6 + $0x28] sm:$0xf]
    %v60 = vld [vmem:[#allocation6 + $0x2c] sm:$0xf]
    %v61 = vld [vmem:[#allocation6 + $0x30] sm:$0xf]
    %v62 = vld [vmem:[#allocation6 + $0x34] sm:$0xf]
    %v63 = vld [vmem:[#allocation6 + $0x38] sm:$0xf]
    %v64 = vld [vmem:[#allocation6 + $0x3c] sm:$0xf]
    %v65 = vld [vmem:[#allocation6 + $0x40] sm:$0xf]
    %v66 = vld [vmem:[#allocation6 + $0x44] sm:$0xf]
    %v67 = vld [vmem:[#allocation6 + $0x48] sm:$0xf]
    %v68 = vld [vmem:[#allocation6 + $0x4c] sm:$0xf]
    %v69 = vld [vmem:[#allocation6 + $0x50] sm:$0xf]
    %v70 = vld [vmem:[#allocation6 + $0x54] sm:$0xf]
    %v71 = vld [vmem:[#allocation6 + $0x58] sm:$0xf]
    %v72 = vld [vmem:[#allocation6 + $0x5c] sm:$0xf]
    %v73 = vld [vmem:[#allocation6 + $0x60] sm:$0xf]
    %v74 = vld [vmem:[#allocation6 + $0x64] sm:$0xf]
    %v75 = vld [vmem:[#allocation6 + $0x68] sm:$0xf]
    %v76 = vld [vmem:[#allocation6 + $0x6c] sm:$0xf]
    %v77 = vld [vmem:[#allocation6 + $0x70] sm:$0xf]
    %v78 = vld [vmem:[#allocation6 + $0x74] sm:$0xf]
    %v79 = vld [vmem:[#allocation6 + $0x78] sm:$0xf]
    %v80 = vld [vmem:[#allocation6 + $0x7c] sm:$0xf]
    %v82 = vunpack.c.l.b16 %v47
    %v83 = vunpack.c.h.b16 %v47
    %v84 = vpack.c.b16 %v82, %v82
    %v85 = vpack.c.b16 %v83, %v83
    %v120 = vunpack.c.l.b16 %v49
    %v121 = vunpack.c.l.b16 %v50
    %v122 = vunpack.c.l.b16 %v51
    %v123 = vunpack.c.l.b16 %v52
    %v124 = vunpack.c.l.b16 %v53
    %v125 = vunpack.c.l.b16 %v54
    %v126 = vunpack.c.l.b16 %v55
    %v127 = vunpack.c.l.b16 %v56
    %v128 = vunpack.c.l.b16 %v57
    %v129 = vunpack.c.l.b16 %v58
    %v130 = vunpack.c.l.b16 %v59
    %v131 = vunpack.c.l.b16 %v60
    %v132 = vunpack.c.l.b16 %v61
    %v133 = vunpack.c.l.b16 %v62
    %v134 = vunpack.c.l.b16 %v63
    %v135 = vunpack.c.l.b16 %v64
    %v136 = vunpack.c.l.b16 %v65
    %v137 = vunpack.c.l.b16 %v66
    %v138 = vunpack.c.l.b16 %v67
    %v139 = vunpack.c.l.b16 %v68
    %v140 = vunpack.c.l.b16 %v69
    %v141 = vunpack.c.l.b16 %v70
    %v142 = vunpack.c.l.b16 %v71
    %v143 = vunpack.c.l.b16 %v72
    %v144 = vunpack.c.l.b16 %v73
    %v145 = vunpack.c.l.b16 %v74
    %v146 = vunpack.c.l.b16 %v75
    %v147 = vunpack.c.l.b16 %v76
    %v148 = vunpack.c.l.b16 %v77
    %v149 = vunpack.c.l.b16 %v78
    %v150 = vunpack.c.l.b16 %v79
    %v151 = vunpack.c.l.b16 %v80
    %v152 = vpack.c.b16 %v121, %v120
    %v153 = vpack.c.b16 %v123, %v122
    %v154 = vpack.c.b16 %v125, %v124
    %v155 = vpack.c.b16 %v127, %v126
    %v156 = vpack.c.b16 %v129, %v128
    %v157 = vpack.c.b16 %v131, %v130
    %v158 = vpack.c.b16 %v133, %v132
    %v159 = vpack.c.b16 %v135, %v134
    %v160 = vpack.c.b16 %v137, %v136
    %v161 = vpack.c.b16 %v139, %v138
    %v162 = vpack.c.b16 %v141, %v140
    %v163 = vpack.c.b16 %v143, %v142
    %v164 = vpack.c.b16 %v145, %v144
    %v165 = vpack.c.b16 %v147, %v146
    %v166 = vpack.c.b16 %v149, %v148
    %v167 = vpack.c.b16 %v151, %v150
    %184 = vmatprep.subr.bf16.mxu0 0
    %185 = vmatpush1.bf16.msra.mxu0 %v152
    %186 = vmatprep.subr.bf16.mxu0 0
    %187 = vmatpush1.bf16.msra.mxu0 %v153
    %188 = vmatprep.subr.bf16.mxu0 0
    %189 = vmatpush1.bf16.msra.mxu0 %v154
    %190 = vmatprep.subr.bf16.mxu0 0
    %191 = vmatpush1.bf16.msra.mxu0 %v155
    %192 = vmatprep.subr.bf16.mxu0 0
    %193 = vmatpush1.bf16.msra.mxu0 %v156
    %194 = vmatprep.subr.bf16.mxu0 0
    %195 = vmatpush1.bf16.msra.mxu0 %v157
    %196 = vmatprep.subr.bf16.mxu0 0
    %197 = vmatpush1.bf16.msra.mxu0 %v158
    %198 = vmatprep.subr.bf16.mxu0 0
    %199 = vmatpush1.bf16.msra.mxu0 %v159
    %200 = vmatprep.subr.bf16.mxu0 0
    %201 = vmatpush1.bf16.msra.mxu0 %v160
    %202 = vmatprep.subr.bf16.mxu0 0
    %203 = vmatpush1.bf16.msra.mxu0 %v161
    %204 = vmatprep.subr.bf16.mxu0 0
    %205 = vmatpush1.bf16.msra.mxu0 %v162
    %206 = vmatprep.subr.bf16.mxu0 0
    %207 = vmatpush1.bf16.msra.mxu0 %v163
    %208 = vmatprep.subr.bf16.mxu0 0
    %209 = vmatpush1.bf16.msra.mxu0 %v164
    %210 = vmatprep.subr.bf16.mxu0 0
    %211 = vmatpush1.bf16.msra.mxu0 %v165
    %212 = vmatprep.subr.bf16.mxu0 0
    %213 = vmatpush1.bf16.msra.mxu0 %v166
    %214 = vmatprep.subr.bf16.mxu0 0
    %215 = vmatpush1.bf16.msra.mxu0 %v167
    %216 = vmatprep.mubr.bf16.mxu0 %v85
    %217 = vmatmul.mubr.bf16.gmra.mrb[0].mxu0 %v84
    %v218 = vpop.f32.mrb[0].mxu0
    %v219 = vadd.f32 0.0, %v218
    %v220 = vpop.f32.mrb[0].mxu0
    %v221 = vpop.f32.mrb[0].mxu0
    %v222 = vpop.f32.mrb[0].mxu0
    %223 = vdwg.mxu0
    %v224 = vadd.f32 %v48, %v219
    %225 = vst [vmem:[#allocation2] sm:$0xff] %v224
    // Predicated region
    $region26: #{tpu_custom_call.1} parent=1 // pred_check
      %p226 = pneg %p42
    $region27: #{tpu_custom_call.1} parent=1 // pred_check_branch
      %228 = sbr.rel (%p226) target = $region29
    $region28: #{tpu_custom_call.1} parent=1 // pred_region
      %v229 = vld [vmem:[#allocation2] sm:$0xff]
      %v230 = vld [vmem:[%s2] sm:$0x1]
      %v232 = vlaneseq
      %v233 = vshrl.u32 %v232, 7
      %v234 = vsub.s32 0, %v233
      %v235 = vrot.slane %v230, %v234
      %v237 = vadd.f32 %v229, %v235
      %v238 = vpack.c.bf16 %v237, %v237
      %239 = vst [vmem:[#allocation8] sm:$0xf] %v238
    $region29: #{tpu_custom_call.1} parent=1 // pred_fallthru
      _
    // Predicated region
    $region30: #{tpu_custom_call.1} parent=1 // pred_check
      _
    $region31: #{tpu_custom_call.1} parent=1 // pred_check_branch
      %241 = sbr.rel (0) target = $region33
    $region32: #{tpu_custom_call.1} parent=1 // pred_region
      %s243 = ssub.s32 64, 64
      %244 = vsyncadd [#allocation5], %s243
      %s246 = sshll.u32 [#allocation8], 4
      %s247 = int_to_ptr.vmem [resolvable:$true] %s246
      %249 = dma.vmem_to_hbm [thread:$0]  %s247, 64, %s3, [#allocation5]
    $region33: #{tpu_custom_call.1} parent=1 // pred_fallthru
      _
    // Predicated region
    $region34: #{tpu_custom_call.1} parent=1 // pred_check
      _
    $region35: #{tpu_custom_call.1} parent=1 // pred_check_branch
      %251 = sbr.rel (0) target = $region37
    $region36: #{tpu_custom_call.1} parent=1 // pred_region
      %252 = dma.done [#allocation5], 64
    $region37: #{tpu_custom_call.1} parent=1 // pred_fallthru
      _
    %253 = vsyncpa [#allocation4], 1
    %254 = vsyncpa [#allocation7], 1
    %255 = vsyncpa [#allocation5], 1

</llo_original>
